<compile_context>
chip_gen: v6e
topology: v6e:2x2x1
jax: 0.10.0
libtpu: 0.0.40
codegen_flags: <defaults>
</compile_context>

<pallas_src>
import jax
import jax.numpy as jnp
from jax.experimental import pallas as pl
from jax.experimental.pallas import tpu as pltpu

# --- static hyperparameters (baked into the kernel) ---------------------------
OBS_DIM = 24
HIDDEN_DIM = 32          # feature_dim == hidden_dim for obs_type='states'
ACTION_DIM = 6
BATCH = 128              # multiple of 8; many actor evals batched per call
LOG_STD_MIN = -10.0
LOG_STD_MAX = 2.0
LN_EPS = 1e-5
OUT_PAD = HIDDEN_DIM     # padded output lane-width (mu|std live in lanes 0:12)


def actor_kernel(obs_ref, w1_ref, w23_ref, vec_ref, out_ref):
    # packed bias / LayerNorm vectors: one [5, HIDDEN_DIM] buffer
    b1 = vec_ref[0:1, :]       # Linear1 bias
    g = vec_ref[1:2, :]        # LayerNorm weight
    beta = vec_ref[2:3, :]     # LayerNorm bias
    b2 = vec_ref[3:4, :]       # Linear2 bias
    b3 = vec_ref[4:5, :]       # Linear3 bias (zero-padded to HIDDEN_DIM lanes)

    # ---- trunk: Linear -> LayerNorm -> Tanh ----
    x = obs_ref[...]                                               # [B, OBS_DIM]
    h = jnp.dot(x, w1_ref[...], preferred_element_type=jnp.float32) + b1

    mean = jnp.mean(h, axis=-1, keepdims=True)
    var = jnp.mean(jnp.square(h - mean), axis=-1, keepdims=True)
    h = (h - mean) * jax.lax.rsqrt(var + LN_EPS)
    h = h * g + beta
    h = jnp.tanh(h)                                                # [B, HIDDEN_DIM]

    # ---- policy: Linear -> ReLU -> Linear ----
    w2 = w23_ref[:HIDDEN_DIM, :]                                   # [32, 32]
    w3 = w23_ref[HIDDEN_DIM:, :]                                   # [32, 32] (cols >=12 zero)
    p = jnp.dot(h, w2, preferred_element_type=jnp.float32) + b2
    p = jnp.maximum(p, 0.0)                                        # ReLU
    out = jnp.dot(p, w3, preferred_element_type=jnp.float32) + b3  # [B, OUT_PAD]
    # lanes 0:ACTION_DIM            -> mu (raw)
    # lanes ACTION_DIM:2*ACTION_DIM -> log_std (to be squashed)
    # lanes >= 2*ACTION_DIM         -> padding (discarded by the wrapper)

    # ---- log_std squash applied slab-wide, selected via lane mask ----
    ls = jnp.tanh(out)                                             # in (-1, 1): exp is safe
    ls = LOG_STD_MIN + 0.5 * (LOG_STD_MAX - LOG_STD_MIN) * (ls + 1.0)
    std = jnp.exp(ls)

    lane = jax.lax.broadcasted_iota(jnp.int32, out.shape, dimension=1)
    out_ref[...] = jnp.where(lane < ACTION_DIM, out, std)


def diag_gaussian_actor(obs, packed_params):
    """Full forward pass in one Pallas call; returns (mu, std)."""
    w1, w23, vecs = packed_params
    obs = obs.astype(jnp.float32)
    B = obs.shape[0]
    # Pad batch to a multiple of 8 (f32 sublane) so the VMEM layout is dense.
    B_pad = ((B + 7) // 8) * 8
    if B_pad != B:
        obs = jnp.pad(obs, ((0, B_pad - B), (0, 0)))

    vmem = pl.BlockSpec(memory_space=pltpu.MemorySpace.VMEM)
    out = pl.pallas_call(
        actor_kernel,
        out_shape=jax.ShapeDtypeStruct((B_pad, OUT_PAD), jnp.float32),
        in_specs=[vmem, vmem, vmem, vmem],
        out_specs=vmem,
    )(obs, w1, w23, vecs)

    mu = out[:B, :ACTION_DIM]
    std = out[:B, ACTION_DIM:2 * ACTION_DIM]
    return mu, std


def init_params(key):
    """Deterministic synthetic parameter init, in the unpacked (reference) layout."""
    k1, k2, k3 = jax.random.split(key, 3)
    # Linear weights stored as [in, out] (transpose of PyTorch's [out, in]).
    w1 = jax.random.normal(k1, (OBS_DIM, HIDDEN_DIM), jnp.float32) / jnp.sqrt(OBS_DIM)
    b1 = jnp.zeros((HIDDEN_DIM,), jnp.float32)
    g = jnp.ones((HIDDEN_DIM,), jnp.float32)          # LayerNorm weight
    beta = jnp.zeros((HIDDEN_DIM,), jnp.float32)      # LayerNorm bias
    w2 = jax.random.normal(k2, (HIDDEN_DIM, HIDDEN_DIM), jnp.float32) / jnp.sqrt(HIDDEN_DIM)
    b2 = jnp.zeros((HIDDEN_DIM,), jnp.float32)
    w3 = jax.random.normal(k3, (HIDDEN_DIM, 2 * ACTION_DIM), jnp.float32) / jnp.sqrt(HIDDEN_DIM)
    b3 = jnp.zeros((2 * ACTION_DIM,), jnp.float32)
    return (w1, b1, g, beta, w2, b2, w3, b3)


def pack_params(params):
    """One-time packing into the 3 kernel operands (done outside the hot path)."""
    w1, b1, g, beta, w2, b2, w3, b3 = params
    # w3 zero-padded to [HIDDEN_DIM, OUT_PAD], stacked under w2 -> [2*HIDDEN_DIM, OUT_PAD]
    w3_pad = jnp.zeros((HIDDEN_DIM, OUT_PAD), jnp.float32).at[:, :2 * ACTION_DIM].set(w3)
    w23 = jnp.concatenate([w2, w3_pad], axis=0)
    b3_pad = jnp.zeros((OUT_PAD,), jnp.float32).at[:2 * ACTION_DIM].set(b3)
    vecs = jnp.stack([b1, g, beta, b2, b3_pad], axis=0)   # [5, HIDDEN_DIM]
    return (w1, w23, vecs)


def reference_forward(obs, params):
    """Pure-JAX reference mirroring the PyTorch forward (for sanity check)."""
    w1, b1, g, beta, w2, b2, w3, b3 = params
    h = obs @ w1 + b1
    mean = jnp.mean(h, axis=-1, keepdims=True)
    var = jnp.mean(jnp.square(h - mean), axis=-1, keepdims=True)
    h = (h - mean) / jnp.sqrt(var + LN_EPS) * g + beta
    h = jnp.tanh(h)
    p = jnp.maximum(h @ w2 + b2, 0.0)
    out = p @ w3 + b3
    mu, log_std = out[:, :ACTION_DIM], out[:, ACTION_DIM:]
    log_std = jnp.tanh(log_std)
    log_std = LOG_STD_MIN + 0.5 * (LOG_STD_MAX - LOG_STD_MIN) * (log_std + 1.0)
    return mu, jnp.exp(log_std)


if __name__ == "__main__":
    key = jax.random.PRNGKey(0)
    k_obs, k_params = jax.random.split(key)
    obs = jax.random.normal(k_obs, (BATCH, OBS_DIM), jnp.float32)
    params = init_params(k_params)
    packed = pack_params(params)   # one-time prep, amortized across calls

    mu, std = diag_gaussian_actor(obs, packed)
    jax.block_until_ready((mu, std))

    # sanity check against pure-JAX reference
    mu_ref, std_ref = reference_forward(obs, params)
    assert jnp.allclose(mu, mu_ref, atol=1e-5, rtol=1e-5), "mu mismatch"
    assert jnp.allclose(std, std_ref, atol=1e-5, rtol=1e-5), "std mismatch"
    assert not bool(jnp.any(jnp.isnan(mu))) and not bool(jnp.any(jnp.isnan(std)))

    # TODO(synk): the Normal / SquashedNormal / Independent distribution objects
    # (and the isnan pdb checks) are python-side wrappers over (mu, std); no
    # tensor compute to port.
    print("KERNEL_OK")
</pallas_src>

<mosaic_0001>
module attributes {stable_mosaic.version = 11 : i64} {
  func.func @actor_kernel(%arg0: memref<128x24xf32, #tpu.memory_space<vmem>>, %arg1: memref<24x32xf32, #tpu.memory_space<vmem>>, %arg2: memref<64x32xf32, #tpu.memory_space<vmem>>, %arg3: memref<5x32xf32, #tpu.memory_space<vmem>>, %arg4: memref<128x32xf32, #tpu.memory_space<vmem>>) attributes {dimension_semantics = [], scalar_prefetch = 0 : i64, scratch_operands = 0 : i64, tpu.core_type = #tpu.core_type<tc>} {
    %c0 = arith.constant 0 : index
    %c0_0 = arith.constant 0 : index
    %0 = vector.load %arg3[%c0, %c0_0] : memref<5x32xf32, #tpu.memory_space<vmem>>, vector<1x32xf32>
    %c1 = arith.constant 1 : index
    %c0_1 = arith.constant 0 : index
    %1 = vector.load %arg3[%c1, %c0_1] : memref<5x32xf32, #tpu.memory_space<vmem>>, vector<1x32xf32>
    %c2 = arith.constant 2 : index
    %c0_2 = arith.constant 0 : index
    %2 = vector.load %arg3[%c2, %c0_2] : memref<5x32xf32, #tpu.memory_space<vmem>>, vector<1x32xf32>
    %c3 = arith.constant 3 : index
    %c0_3 = arith.constant 0 : index
    %3 = vector.load %arg3[%c3, %c0_3] : memref<5x32xf32, #tpu.memory_space<vmem>>, vector<1x32xf32>
    %c4 = arith.constant 4 : index
    %c0_4 = arith.constant 0 : index
    %4 = vector.load %arg3[%c4, %c0_4] : memref<5x32xf32, #tpu.memory_space<vmem>>, vector<1x32xf32>
    %c0_5 = arith.constant 0 : index
    %c0_6 = arith.constant 0 : index
    %5 = vector.load %arg0[%c0_5, %c0_6] : memref<128x24xf32, #tpu.memory_space<vmem>>, vector<128x24xf32>
    %c0_7 = arith.constant 0 : index
    %c0_8 = arith.constant 0 : index
    %6 = vector.load %arg1[%c0_7, %c0_8] : memref<24x32xf32, #tpu.memory_space<vmem>>, vector<24x32xf32>
    %cst = arith.constant dense<0.000000e+00> : vector<128x32xf32>
    %7 = tpu.matmul %5, %6, %cst {dimension_numbers = #tpu.dot_dimension_numbers<[1], [0], [0], [1], [0, 0, 1, 1], [], []>} : vector<128x24xf32>, vector<24x32xf32>, vector<128x32xf32> -> vector<128x32xf32>
    %8 = vector.broadcast %0 : vector<1x32xf32> to vector<128x32xf32>
    %9 = arith.addf %7, %8 : vector<128x32xf32>
    %cst_9 = arith.constant dense<0.000000e+00> : vector<128xf32>
    %10 = vector.multi_reduction <add>, %9, %cst_9 [1] : vector<128x32xf32> to vector<128xf32>
    %11 = vector.shape_cast %10 : vector<128xf32> to vector<128x1xf32>
    %cst_10 = arith.constant 3.200000e+01 : f32
    %12 = vector.broadcast %cst_10 : f32 to vector<128x1xf32>
    %13 = arith.divf %11, %12 : vector<128x1xf32>
    %14 = vector.broadcast %13 : vector<128x1xf32> to vector<128x32xf32>
    %15 = arith.subf %9, %14 : vector<128x32xf32>
    %16 = arith.mulf %15, %15 : vector<128x32xf32>
    %cst_11 = arith.constant dense<0.000000e+00> : vector<128xf32>
    %17 = vector.multi_reduction <add>, %16, %cst_11 [1] : vector<128x32xf32> to vector<128xf32>
    %18 = vector.shape_cast %17 : vector<128xf32> to vector<128x1xf32>
    %cst_12 = arith.constant 3.200000e+01 : f32
    %19 = vector.broadcast %cst_12 : f32 to vector<128x1xf32>
    %20 = arith.divf %18, %19 : vector<128x1xf32>
    %21 = vector.broadcast %13 : vector<128x1xf32> to vector<128x32xf32>
    %22 = arith.subf %9, %21 : vector<128x32xf32>
    %cst_13 = arith.constant 9.99999974E-6 : f32
    %23 = vector.broadcast %cst_13 : f32 to vector<128x1xf32>
    %24 = arith.addf %20, %23 : vector<128x1xf32>
    %25 = math.rsqrt %24 : vector<128x1xf32>
    %26 = vector.broadcast %25 : vector<128x1xf32> to vector<128x32xf32>
    %27 = arith.mulf %22, %26 : vector<128x32xf32>
    %28 = vector.broadcast %1 : vector<1x32xf32> to vector<128x32xf32>
    %29 = arith.mulf %27, %28 : vector<128x32xf32>
    %30 = vector.broadcast %2 : vector<1x32xf32> to vector<128x32xf32>
    %31 = arith.addf %29, %30 : vector<128x32xf32>
    %32 = math.tanh %31 : vector<128x32xf32>
    %c0_14 = arith.constant 0 : index
    %c0_15 = arith.constant 0 : index
    %33 = vector.load %arg2[%c0_14, %c0_15] : memref<64x32xf32, #tpu.memory_space<vmem>>, vector<32x32xf32>
    %c32 = arith.constant 32 : index
    %c0_16 = arith.constant 0 : index
    %34 = vector.load %arg2[%c32, %c0_16] : memref<64x32xf32, #tpu.memory_space<vmem>>, vector<32x32xf32>
    %cst_17 = arith.constant dense<0.000000e+00> : vector<128x32xf32>
    %35 = tpu.matmul %32, %33, %cst_17 {dimension_numbers = #tpu.dot_dimension_numbers<[1], [0], [0], [1], [0, 0, 1, 1], [], []>} : vector<128x32xf32>, vector<32x32xf32>, vector<128x32xf32> -> vector<128x32xf32>
    %36 = vector.broadcast %3 : vector<1x32xf32> to vector<128x32xf32>
    %37 = arith.addf %35, %36 : vector<128x32xf32>
    %cst_18 = arith.constant 0.000000e+00 : f32
    %38 = vector.broadcast %cst_18 : f32 to vector<128x32xf32>
    %39 = arith.maximumf %37, %38 : vector<128x32xf32>
    %cst_19 = arith.constant dense<0.000000e+00> : vector<128x32xf32>
    %40 = tpu.matmul %39, %34, %cst_19 {dimension_numbers = #tpu.dot_dimension_numbers<[1], [0], [0], [1], [0, 0, 1, 1], [], []>} : vector<128x32xf32>, vector<32x32xf32>, vector<128x32xf32> -> vector<128x32xf32>
    %41 = vector.broadcast %4 : vector<1x32xf32> to vector<128x32xf32>
    %42 = arith.addf %40, %41 : vector<128x32xf32>
    %43 = math.tanh %42 : vector<128x32xf32>
    %cst_20 = arith.constant 1.000000e+00 : f32
    %44 = vector.broadcast %cst_20 : f32 to vector<128x32xf32>
    %45 = arith.addf %43, %44 : vector<128x32xf32>
    %cst_21 = arith.constant 6.000000e+00 : f32
    %46 = vector.broadcast %cst_21 : f32 to vector<128x32xf32>
    %47 = arith.mulf %46, %45 : vector<128x32xf32>
    %cst_22 = arith.constant -1.000000e+01 : f32
    %48 = vector.broadcast %cst_22 : f32 to vector<128x32xf32>
    %49 = arith.addf %48, %47 : vector<128x32xf32>
    %50 = math.exp %49 : vector<128x32xf32>
    %51 = tpu.iota {dimensions = array<i32: 1>} : vector<128x32xi32>
    %c6_i32 = arith.constant 6 : i32
    %52 = vector.broadcast %c6_i32 : i32 to vector<128x32xi32>
    %53 = arith.cmpi slt, %51, %52 : vector<128x32xi32>
    %54 = arith.select %53, %42, %50 : vector<128x32xi1>, vector<128x32xf32>
    %c0_23 = arith.constant 0 : index
    %c0_24 = arith.constant 0 : index
    %55 = vector.load %arg4[%c0_23, %c0_24] : memref<128x32xf32, #tpu.memory_space<vmem>>, vector<128x32xf32>
    tpu.vector_store %arg4[%c0_23, %c0_24], %54 {strides = array<i32>} : memref<128x32xf32, #tpu.memory_space<vmem>>, vector<128x32xf32>,
    return
  }
}

</mosaic_0001>

<llo_original>
// kernel: tpu_custom_call.1
$region0: #{tpu_custom_call.1}
  #allocation0 [shape = 'u32[]', space=smem, size = 0x4, offset = 0x4, fixed_abs, tag = 'smem constant byte address 0x4 - core index']
  #allocation1 [shape = 'u32[144,128]{1,0:T(1,128)}', space=vmem, size = 0x12000, scoped, tag = 'internal scratch']
  %s0 = inlined_call_operand.vmem [shape: f32[128,24], index: 0, kind: input, shape index: {}]
  %s1 = inlined_call_operand.vmem [shape: f32[24,32], index: 1, kind: input, shape index: {}]
  %s2 = inlined_call_operand.vmem [shape: f32[64,32], index: 2, kind: input, shape index: {}]
  %s3 = inlined_call_operand.vmem [shape: f32[5,32], index: 3, kind: input, shape index: {}]
  %s4 = inlined_call_operand.vmem [shape: f32[128,32], index: 4, kind: output, shape index: {}]
  %s5 = sld [smem:[#allocation0]]
  $region26: #{tpu_custom_call.1} parent=0
    _
  %s7 = ssub.s32 1, %s5
  %s8 = scalar_select 0, %s7, %s5
  // Predicated region
  $region2: #{tpu_custom_call.1} parent=0 // pred_check
    _
  $region3: #{tpu_custom_call.1} parent=0 // pred_check_branch
    %10 = sbr.rel (0) target = $region5
  $region4: #{tpu_custom_call.1} parent=0 // pred_region
    _
  $region5: #{tpu_custom_call.1} parent=0 // pred_fallthru
    _
  // Predicated region
  $region6: #{tpu_custom_call.1} parent=0 // pred_check
    _
  $region7: #{tpu_custom_call.1} parent=0 // pred_check_branch
    %12 = sbr.rel (0) target = $region9
  $region8: #{tpu_custom_call.1} parent=0 // pred_region
    _
  $region9: #{tpu_custom_call.1} parent=0 // pred_fallthru
    _
  // Predicated region
  $region10: #{tpu_custom_call.1} parent=0 // pred_check
    _
  $region11: #{tpu_custom_call.1} parent=0 // pred_check_branch
    %14 = sbr.rel (0) target = $region13
  $region12: #{tpu_custom_call.1} parent=0 // pred_region
    _
  $region13: #{tpu_custom_call.1} parent=0 // pred_fallthru
    _
  // Predicated region
  $region14: #{tpu_custom_call.1} parent=0 // pred_check
    _
  $region15: #{tpu_custom_call.1} parent=0 // pred_check_branch
    %16 = sbr.rel (0) target = $region17
  $region16: #{tpu_custom_call.1} parent=0 // pred_region
    _
  $region17: #{tpu_custom_call.1} parent=0 // pred_fallthru
    _
  %v17 = vld [vmem:[%s3] sm:$0x1]
  %v18 = vld [vmem:[%s3 + $0x1] sm:$0x1]
  %v19 = vld [vmem:[%s3 + $0x2] sm:$0x1]
  %v20 = vld [vmem:[%s3 + $0x3] sm:$0x1]
  %v21 = vld [vmem:[%s3 + $0x4] sm:$0x1]
  %v22 = vld [vmem:[%s0] sm:$0xff]
  %v23 = vld [vmem:[%s0 + $0x8] sm:$0xff]
  %v24 = vld [vmem:[%s0 + $0x10] sm:$0xff]
  %v25 = vld [vmem:[%s0 + $0x18] sm:$0xff]
  %v26 = vld [vmem:[%s0 + $0x20] sm:$0xff]
  %v27 = vld [vmem:[%s0 + $0x28] sm:$0xff]
  %v28 = vld [vmem:[%s0 + $0x30] sm:$0xff]
  %v29 = vld [vmem:[%s0 + $0x38] sm:$0xff]
  %v30 = vld [vmem:[%s0 + $0x40] sm:$0xff]
  %v31 = vld [vmem:[%s0 + $0x48] sm:$0xff]
  %v32 = vld [vmem:[%s0 + $0x50] sm:$0xff]
  %v33 = vld [vmem:[%s0 + $0x58] sm:$0xff]
  %v34 = vld [vmem:[%s0 + $0x60] sm:$0xff]
  %v35 = vld [vmem:[%s0 + $0x68] sm:$0xff]
  %v36 = vld [vmem:[%s0 + $0x70] sm:$0xff]
  %v37 = vld [vmem:[%s0 + $0x78] sm:$0xff]
  %v38 = vld [vmem:[%s1] sm:$0xff]
  %v39 = vld [vmem:[%s1 + $0x8] sm:$0xff]
  %v40 = vld [vmem:[%s1 + $0x10] sm:$0xff]
  %v41 = vlaneseq
  %v42 = vshrl.u32 %v41, 7
  %v43 = vsub.s32 0, %v42
  %v44 = vrot.slane %v17, %v43
  %vm45 = vcmask 195584
  %v47 = vsel %vm45, %v22, 0
  %v50 = vsel %vm45, %v23, 0
  %v53 = vsel %vm45, %v24, 0
  %v56 = vsel %vm45, %v25, 0
  %v59 = vsel %vm45, %v26, 0
  %v62 = vsel %vm45, %v27, 0
  %v65 = vsel %vm45, %v28, 0
  %v68 = vsel %vm45, %v29, 0
  %v71 = vsel %vm45, %v30, 0
  %v74 = vsel %vm45, %v31, 0
  %v77 = vsel %vm45, %v32, 0
  %v80 = vsel %vm45, %v33, 0
  %v83 = vsel %vm45, %v34, 0
  %v86 = vsel %vm45, %v35, 0
  %v89 = vsel %vm45, %v36, 0
  %v92 = vsel %vm45, %v37, 0
  %94 = vmatprep.subr.mxu0 0.0
  %95 = vmatpush1.msra.mxu0 0.0
  %96 = vmatprep.subr.mxu0 0.0
  %97 = vmatpush1.msra.mxu0 0.0
  %98 = vmatprep.subr.mxu0 0.0
  %99 = vmatpush1.msra.mxu0 0.0
  %100 = vmatprep.subr.mxu0 0.0
  %101 = vmatpush1.msra.mxu0 0.0
  %102 = vmatprep.subr.mxu0 0.0
  %103 = vmatpush1.msra.mxu0 0.0
  %104 = vmatprep.subr.mxu0 0.0
  %105 = vmatpush1.msra.mxu0 0.0
  %106 = vmatprep.subr.mxu0 0.0
  %107 = vmatpush1.msra.mxu0 0.0
  %108 = vmatprep.subr.mxu0 0.0
  %109 = vmatpush1.msra.mxu0 0.0
  %110 = vmatprep.subr.mxu0 0.0
  %111 = vmatpush1.msra.mxu0 0.0
  %112 = vmatprep.subr.mxu0 0.0
  %113 = vmatpush1.msra.mxu0 0.0
  %114 = vmatprep.subr.mxu0 0.0
  %115 = vmatpush1.msra.mxu0 0.0
  %116 = vmatprep.subr.mxu0 0.0
  %117 = vmatpush1.msra.mxu0 0.0
  %118 = vmatprep.subr.mxu0 0.0
  %119 = vmatpush1.msra.mxu0 0.0
  %120 = vmatprep.subr.mxu0 0.0
  %121 = vmatpush1.msra.mxu0 %v40
  %122 = vmatprep.subr.mxu0 0.0
  %123 = vmatpush1.msra.mxu0 %v39
  %124 = vmatprep.subr.mxu0 0.0
  %125 = vmatpush1.msra.mxu0 %v38
  %126 = vmatprep.subr.mxu0 0.0
  %127 = vmatpush2.msra.mxu0 0.0
  %128 = vmatprep.subr.mxu0 0.0
  %129 = vmatpush2.msra.mxu0 0.0
  %130 = vmatprep.subr.mxu0 0.0
  %131 = vmatpush2.msra.mxu0 0.0
  %132 = vmatprep.subr.mxu0 0.0
  %133 = vmatpush2.msra.mxu0 0.0
  %134 = vmatprep.subr.mxu0 0.0
  %135 = vmatpush2.msra.mxu0 0.0
  %136 = vmatprep.subr.mxu0 0.0
  %137 = vmatpush2.msra.mxu0 0.0
  %138 = vmatprep.subr.mxu0 0.0
  %139 = vmatpush2.msra.mxu0 0.0
  %140 = vmatprep.subr.mxu0 0.0
  %141 = vmatpush2.msra.mxu0 0.0
  %142 = vmatprep.subr.mxu0 0.0
  %143 = vmatpush2.msra.mxu0 0.0
  %144 = vmatprep.subr.mxu0 0.0
  %145 = vmatpush2.msra.mxu0 0.0
  %146 = vmatprep.subr.mxu0 0.0
  %147 = vmatpush2.msra.mxu0 0.0
  %148 = vmatprep.subr.mxu0 0.0
  %149 = vmatpush2.msra.mxu0 0.0
  %150 = vmatprep.subr.mxu0 0.0
  %151 = vmatpush2.msra.mxu0 0.0
  %152 = vmatprep.subr.mxu0 0.0
  %153 = vmatpush2.msra.mxu0 0.0
  %154 = vmatprep.subr.mxu0 0.0
  %155 = vmatpush2.msra.mxu0 0.0
  %156 = vmatprep.subr.mxu0 0.0
  %157 = vmatpush2.msra.mxu0 0.0
  %158 = vmatprep.mubr.f32.mxu0 0.0
  %159 = vmatmul.mubr.f32.gmra.mxu0 %v47
  %v160 = vpop.f32.mrf.mxu0
  %v161 = vadd.f32 %v44, %v160
  %v162 = vpop.f32.mrf.mxu0
  %163 = vmatprep.mubr.f32.mxu0 0.0
  %164 = vmatmul.mubr.f32.gmra.mxu0 %v50
  %v165 = vpop.f32.mrf.mxu0
  %v166 = vadd.f32 %v44, %v165
  %v167 = vpop.f32.mrf.mxu0
  %168 = vmatprep.mubr.f32.mxu0 0.0
  %169 = vmatmul.mubr.f32.gmra.mxu0 %v53
  %v170 = vpop.f32.mrf.mxu0
  %v171 = vadd.f32 %v44, %v170
  %v172 = vpop.f32.mrf.mxu0
  %173 = vmatprep.mubr.f32.mxu0 0.0
  %174 = vmatmul.mubr.f32.gmra.mxu0 %v56
  %v175 = vpop.f32.mrf.mxu0
  %v176 = vadd.f32 %v44, %v175
  %v177 = vpop.f32.mrf.mxu0
  %178 = vmatprep.mubr.f32.mxu0 0.0
  %179 = vmatmul.mubr.f32.gmra.mxu0 %v59
  %v180 = vpop.f32.mrf.mxu0
  %v181 = vadd.f32 %v44, %v180
  %v182 = vpop.f32.mrf.mxu0
  %183 = vmatprep.mubr.f32.mxu0 0.0
  %184 = vmatmul.mubr.f32.gmra.mxu0 %v62
  %v185 = vpop.f32.mrf.mxu0
  %v186 = vadd.f32 %v44, %v185
  %v187 = vpop.f32.mrf.mxu0
  %188 = vmatprep.mubr.f32.mxu0 0.0
  %189 = vmatmul.mubr.f32.gmra.mxu0 %v65
  %v190 = vpop.f32.mrf.mxu0
  %v191 = vadd.f32 %v44, %v190
  %v192 = vpop.f32.mrf.mxu0
  %193 = vmatprep.mubr.f32.mxu0 0.0
  %194 = vmatmul.mubr.f32.gmra.mxu0 %v68
  %v195 = vpop.f32.mrf.mxu0
  %v196 = vadd.f32 %v44, %v195
  %v197 = vpop.f32.mrf.mxu0
  %198 = vmatprep.mubr.f32.mxu0 0.0
  %199 = vmatmul.mubr.f32.gmra.mxu0 %v71
  %v200 = vpop.f32.mrf.mxu0
  %v201 = vadd.f32 %v44, %v200
  %v202 = vpop.f32.mrf.mxu0
  %203 = vmatprep.mubr.f32.mxu0 0.0
  %204 = vmatmul.mubr.f32.gmra.mxu0 %v74
  %v205 = vpop.f32.mrf.mxu0
  %v206 = vadd.f32 %v44, %v205
  %v207 = vpop.f32.mrf.mxu0
  %208 = vmatprep.mubr.f32.mxu0 0.0
  %209 = vmatmul.mubr.f32.gmra.mxu0 %v77
  %v210 = vpop.f32.mrf.mxu0
  %v211 = vadd.f32 %v44, %v210
  %v212 = vpop.f32.mrf.mxu0
  %213 = vmatprep.mubr.f32.mxu0 0.0
  %214 = vmatmul.mubr.f32.gmra.mxu0 %v80
  %v215 = vpop.f32.mrf.mxu0
  %v216 = vadd.f32 %v44, %v215
  %v217 = vpop.f32.mrf.mxu0
  %218 = vmatprep.mubr.f32.mxu0 0.0
  %219 = vmatmul.mubr.f32.gmra.mxu0 %v83
  %v220 = vpop.f32.mrf.mxu0
  %v221 = vadd.f32 %v44, %v220
  %v222 = vpop.f32.mrf.mxu0
  %223 = vmatprep.mubr.f32.mxu0 0.0
  %224 = vmatmul.mubr.f32.gmra.mxu0 %v86
  %v225 = vpop.f32.mrf.mxu0
  %v226 = vadd.f32 %v44, %v225
  %v227 = vpop.f32.mrf.mxu0
  %228 = vmatprep.mubr.f32.mxu0 0.0
  %229 = vmatmul.mubr.f32.gmra.mxu0 %v89
  %v230 = vpop.f32.mrf.mxu0
  %v231 = vadd.f32 %v44, %v230
  %v232 = vpop.f32.mrf.mxu0
  %233 = vmatprep.mubr.f32.mxu0 0.0
  %234 = vmatmul.mubr.f32.gmra.mxu0 %v92
  %v235 = vpop.f32.mrf.mxu0
  %v236 = vadd.f32 %v44, %v235
  %v237 = vpop.f32.mrf.mxu0
  %238 = vdwg.mxu0
  %vm239 = vcmask 261120
  %v240 = vsel %vm239, %v161, 0.0
  %241 = vadd.xlane.f32.xlu0 %v240
  %v242 = vpop.xlane.xlu0 %241
  %v243 = vsel %vm239, %v166, 0.0
  %244 = vadd.xlane.f32.xlu0 %v243
  %v245 = vpop.xlane.xlu0 %244
  %v246 = vsel %vm239, %v171, 0.0
  %247 = vadd.xlane.f32.xlu0 %v246
  %v248 = vpop.xlane.xlu0 %247
  %v249 = vsel %vm239, %v176, 0.0
  %250 = vadd.xlane.f32.xlu0 %v249
  %v251 = vpop.xlane.xlu0 %250
  %v252 = vsel %vm239, %v181, 0.0
  %253 = vadd.xlane.f32.xlu0 %v252
  %v254 = vpop.xlane.xlu0 %253
  %v255 = vsel %vm239, %v186, 0.0
  %256 = vadd.xlane.f32.xlu0 %v255
  %v257 = vpop.xlane.xlu0 %256
  %v258 = vsel %vm239, %v191, 0.0
  %259 = vadd.xlane.f32.xlu0 %v258
  %v260 = vpop.xlane.xlu0 %259
  %v261 = vsel %vm239, %v196, 0.0
  %262 = vadd.xlane.f32.xlu0 %v261
  %v263 = vpop.xlane.xlu0 %262
  %v264 = vsel %vm239, %v201, 0.0
  %265 = vadd.xlane.f32.xlu0 %v264
  %v266 = vpop.xlane.xlu0 %265
  %v267 = vsel %vm239, %v206, 0.0
  %268 = vadd.xlane.f32.xlu0 %v267
  %v269 = vpop.xlane.xlu0 %268
  %v270 = vsel %vm239, %v211, 0.0
  %271 = vadd.xlane.f32.xlu0 %v270
  %v272 = vpop.xlane.xlu0 %271
  %v273 = vsel %vm239, %v216, 0.0
  %274 = vadd.xlane.f32.xlu0 %v273
  %v275 = vpop.xlane.xlu0 %274
  %v276 = vsel %vm239, %v221, 0.0
  %277 = vadd.xlane.f32.xlu0 %v276
  %v278 = vpop.xlane.xlu0 %277
  %v279 = vsel %vm239, %v226, 0.0
  %280 = vadd.xlane.f32.xlu0 %v279
  %v281 = vpop.xlane.xlu0 %280
  %v282 = vsel %vm239, %v231, 0.0
  %283 = vadd.xlane.f32.xlu0 %v282
  %v284 = vpop.xlane.xlu0 %283
  %v285 = vsel %vm239, %v236, 0.0
  %286 = vadd.xlane.f32.xlu0 %v285
  %v287 = vpop.xlane.xlu0 %286
  %v288 = vrcp.pop 32.0
  %v289 = vmul.f32 %v242, %v288
  %v290 = vmul.f32 %v245, %v288
  %v291 = vmul.f32 %v248, %v288
  %v292 = vmul.f32 %v251, %v288
  %v293 = vmul.f32 %v254, %v288
  %v294 = vmul.f32 %v257, %v288
  %v295 = vmul.f32 %v260, %v288
  %v296 = vmul.f32 %v263, %v288
  %v297 = vmul.f32 %v266, %v288
  %v298 = vmul.f32 %v269, %v288
  %v299 = vmul.f32 %v272, %v288
  %v300 = vmul.f32 %v275, %v288
  %v301 = vmul.f32 %v278, %v288
  %v302 = vmul.f32 %v281, %v288
  %v303 = vmul.f32 %v284, %v288
  %v304 = vmul.f32 %v287, %v288
  %v305 = vsub.f32 %v161, %v289
  %v306 = vsub.f32 %v166, %v290
  %v307 = vsub.f32 %v171, %v291
  %v308 = vsub.f32 %v176, %v292
  %v309 = vsub.f32 %v181, %v293
  %v310 = vsub.f32 %v186, %v294
  %v311 = vsub.f32 %v191, %v295
  %v312 = vsub.f32 %v196, %v296
  %v313 = vsub.f32 %v201, %v297
  %v314 = vsub.f32 %v206, %v298
  %v315 = vsub.f32 %v211, %v299
  %v316 = vsub.f32 %v216, %v300
  %v317 = vsub.f32 %v221, %v301
  %v318 = vsub.f32 %v226, %v302
  %v319 = vsub.f32 %v231, %v303
  %v320 = vsub.f32 %v236, %v304
  %v321 = vmul.f32 %v305, %v305
  %v322 = vmul.f32 %v306, %v306
  %v323 = vmul.f32 %v307, %v307
  %v324 = vmul.f32 %v308, %v308
  %v325 = vmul.f32 %v309, %v309
  %v326 = vmul.f32 %v310, %v310
  %v327 = vmul.f32 %v311, %v311
  %v328 = vmul.f32 %v312, %v312
  %v329 = vmul.f32 %v313, %v313
  %v330 = vmul.f32 %v314, %v314
  %v331 = vmul.f32 %v315, %v315
  %v332 = vmul.f32 %v316, %v316
  %v333 = vmul.f32 %v317, %v317
  %v334 = vmul.f32 %v318, %v318
  %v335 = vmul.f32 %v319, %v319
  %v336 = vmul.f32 %v320, %v320
  %v337 = vsel %vm239, %v321, 0.0
  %338 = vadd.xlane.f32.xlu0 %v337
  %v339 = vpop.xlane.xlu0 %338
  %v340 = vsel %vm239, %v322, 0.0
  %341 = vadd.xlane.f32.xlu0 %v340
  %v342 = vpop.xlane.xlu0 %341
  %v343 = vsel %vm239, %v323, 0.0
  %344 = vadd.xlane.f32.xlu0 %v343
  %v345 = vpop.xlane.xlu0 %344
  %v346 = vsel %vm239, %v324, 0.0
  %347 = vadd.xlane.f32.xlu0 %v346
  %v348 = vpop.xlane.xlu0 %347
  %v349 = vsel %vm239, %v325, 0.0
  %350 = vadd.xlane.f32.xlu0 %v349
  %v351 = vpop.xlane.xlu0 %350
  %v352 = vsel %vm239, %v326, 0.0
  %353 = vadd.xlane.f32.xlu0 %v352
  %v354 = vpop.xlane.xlu0 %353
  %v355 = vsel %vm239, %v327, 0.0
  %356 = vadd.xlane.f32.xlu0 %v355
  %v357 = vpop.xlane.xlu0 %356
  %v358 = vsel %vm239, %v328, 0.0
  %359 = vadd.xlane.f32.xlu0 %v358
  %v360 = vpop.xlane.xlu0 %359
  %v361 = vsel %vm239, %v329, 0.0
  %362 = vadd.xlane.f32.xlu0 %v361
  %v363 = vpop.xlane.xlu0 %362
  %v364 = vsel %vm239, %v330, 0.0
  %365 = vadd.xlane.f32.xlu0 %v364
  %v366 = vpop.xlane.xlu0 %365
  %v367 = vsel %vm239, %v331, 0.0
  %368 = vadd.xlane.f32.xlu0 %v367
  %v369 = vpop.xlane.xlu0 %368
  %v370 = vsel %vm239, %v332, 0.0
  %371 = vadd.xlane.f32.xlu0 %v370
  %v372 = vpop.xlane.xlu0 %371
  %v373 = vsel %vm239, %v333, 0.0
  %374 = vadd.xlane.f32.xlu0 %v373
  %v375 = vpop.xlane.xlu0 %374
  %v376 = vsel %vm239, %v334, 0.0
  %377 = vadd.xlane.f32.xlu0 %v376
  %v378 = vpop.xlane.xlu0 %377
  %v379 = vsel %vm239, %v335, 0.0
  %380 = vadd.xlane.f32.xlu0 %v379
  %v381 = vpop.xlane.xlu0 %380
  %v382 = vsel %vm239, %v336, 0.0
  %383 = vadd.xlane.f32.xlu0 %v382
  %v384 = vpop.xlane.xlu0 %383
  %v385 = vmul.f32 %v339, %v288
  %v386 = vmul.f32 %v342, %v288
  %v387 = vmul.f32 %v345, %v288
  %v388 = vmul.f32 %v348, %v288
  %v389 = vmul.f32 %v351, %v288
  %v390 = vmul.f32 %v354, %v288
  %v391 = vmul.f32 %v357, %v288
  %v392 = vmul.f32 %v360, %v288
  %v393 = vmul.f32 %v363, %v288
  %v394 = vmul.f32 %v366, %v288
  %v395 = vmul.f32 %v369, %v288
  %v396 = vmul.f32 %v372, %v288
  %v397 = vmul.f32 %v375, %v288
  %v398 = vmul.f32 %v378, %v288
  %v399 = vmul.f32 %v381, %v288
  %v400 = vmul.f32 %v384, %v288
  %v401 = vadd.f32 %v385, 1e-05
  %v402 = vadd.f32 %v386, 1e-05
  %v403 = vadd.f32 %v387, 1e-05
  %v404 = vadd.f32 %v388, 1e-05
  %v405 = vadd.f32 %v389, 1e-05
  %v406 = vadd.f32 %v390, 1e-05
  %v407 = vadd.f32 %v391, 1e-05
  %v408 = vadd.f32 %v392, 1e-05
  %v409 = vadd.f32 %v393, 1e-05
  %v410 = vadd.f32 %v394, 1e-05
  %v411 = vadd.f32 %v395, 1e-05
  %v412 = vadd.f32 %v396, 1e-05
  %v413 = vadd.f32 %v397, 1e-05
  %v414 = vadd.f32 %v398, 1e-05
  %v415 = vadd.f32 %v399, 1e-05
  %v416 = vadd.f32 %v400, 1e-05
  %v417 = vrsqrt.pop %v401
  %v418 = vrsqrt.pop %v402
  %v419 = vrsqrt.pop %v403
  %v420 = vrsqrt.pop %v404
  %v421 = vrsqrt.pop %v405
  %v422 = vrsqrt.pop %v406
  %v423 = vrsqrt.pop %v407
  %v424 = vrsqrt.pop %v408
  %v425 = vrsqrt.pop %v409
  %v426 = vrsqrt.pop %v410
  %v427 = vrsqrt.pop %v411
  %v428 = vrsqrt.pop %v412
  %v429 = vrsqrt.pop %v413
  %v430 = vrsqrt.pop %v414
  %v431 = vrsqrt.pop %v415
  %v432 = vrsqrt.pop %v416
  %v433 = vmul.f32 %v305, %v417
  %v434 = vmul.f32 %v306, %v418
  %v435 = vmul.f32 %v307, %v419
  %v436 = vmul.f32 %v308, %v420
  %v437 = vmul.f32 %v309, %v421
  %v438 = vmul.f32 %v310, %v422
  %v439 = vmul.f32 %v311, %v423
  %v440 = vmul.f32 %v312, %v424
  %v441 = vmul.f32 %v313, %v425
  %v442 = vmul.f32 %v314, %v426
  %v443 = vmul.f32 %v315, %v427
  %v444 = vmul.f32 %v316, %v428
  %v445 = vmul.f32 %v317, %v429
  %v446 = vmul.f32 %v318, %v430
  %v447 = vmul.f32 %v319, %v431
  %v448 = vmul.f32 %v320, %v432
  %v449 = vlaneseq
  %v450 = vshrl.u32 %v449, 7
  %v451 = vsub.s32 0, %v450
  %v452 = vrot.slane %v18, %v451
  %v453 = vmul.f32 %v433, %v452
  %v454 = vmul.f32 %v434, %v452
  %v455 = vmul.f32 %v435, %v452
  %v456 = vmul.f32 %v436, %v452
  %v457 = vmul.f32 %v437, %v452
  %v458 = vmul.f32 %v438, %v452
  %v459 = vmul.f32 %v439, %v452
  %v460 = vmul.f32 %v440, %v452
  %v461 = vmul.f32 %v441, %v452
  %v462 = vmul.f32 %v442, %v452
  %v463 = vmul.f32 %v443, %v452
  %v464 = vmul.f32 %v444, %v452
  %v465 = vmul.f32 %v445, %v452
  %v466 = vmul.f32 %v446, %v452
  %v467 = vmul.f32 %v447, %v452
  %v468 = vmul.f32 %v448, %v452
  %v469 = vlaneseq
  %v470 = vshrl.u32 %v469, 7
  %v471 = vsub.s32 0, %v470
  %v472 = vrot.slane %v19, %v471
  %v473 = vadd.f32 %v453, %v472
  %v474 = vadd.f32 %v454, %v472
  %v475 = vadd.f32 %v455, %v472
  %v476 = vadd.f32 %v456, %v472
  %v477 = vadd.f32 %v457, %v472
  %v478 = vadd.f32 %v458, %v472
  %v479 = vadd.f32 %v459, %v472
  %v480 = vadd.f32 %v460, %v472
  %v481 = vadd.f32 %v461, %v472
  %v482 = vadd.f32 %v462, %v472
  %v483 = vadd.f32 %v463, %v472
  %v484 = vadd.f32 %v464, %v472
  %v485 = vadd.f32 %v465, %v472
  %v486 = vadd.f32 %v466, %v472
  %v487 = vadd.f32 %v467, %v472
  %v488 = vadd.f32 %v468, %v472
  %v489 = vtanh.pop %v473
  %v490 = vtanh.pop %v474
  %v491 = vtanh.pop %v475
  %v492 = vtanh.pop %v476
  %v493 = vtanh.pop %v477
  %v494 = vtanh.pop %v478
  %v495 = vtanh.pop %v479
  %v496 = vtanh.pop %v480
  %v497 = vtanh.pop %v481
  %v498 = vtanh.pop %v482
  %v499 = vtanh.pop %v483
  %v500 = vtanh.pop %v484
  %v501 = vtanh.pop %v485
  %v502 = vtanh.pop %v486
  %v503 = vtanh.pop %v487
  %v504 = vtanh.pop %v488
  %v505 = vld [vmem:[%s2] sm:$0xff]
  %v506 = vld [vmem:[%s2 + $0x8] sm:$0xff]
  %v507 = vld [vmem:[%s2 + $0x10] sm:$0xff]
  %v508 = vld [vmem:[%s2 + $0x18] sm:$0xff]
  %v509 = vld [vmem:[%s2 + $0x20] sm:$0xff]
  %v510 = vld [vmem:[%s2 + $0x28] sm:$0xff]
  %v511 = vld [vmem:[%s2 + $0x30] sm:$0xff]
  %v512 = vld [vmem:[%s2 + $0x38] sm:$0xff]
  %v513 = vlaneseq
  %v514 = vshrl.u32 %v513, 7
  %v515 = vsub.s32 0, %v514
  %v516 = vrot.slane %v20, %v515
  %v518 = vsel %vm239, %v489, 0
  %v521 = vsel %vm239, %v490, 0
  %v524 = vsel %vm239, %v491, 0
  %v527 = vsel %vm239, %v492, 0
  %v530 = vsel %vm239, %v493, 0
  %v533 = vsel %vm239, %v494, 0
  %v536 = vsel %vm239, %v495, 0
  %v539 = vsel %vm239, %v496, 0
  %v542 = vsel %vm239, %v497, 0
  %v545 = vsel %vm239, %v498, 0
  %v548 = vsel %vm239, %v499, 0
  %v551 = vsel %vm239, %v500, 0
  %v554 = vsel %vm239, %v501, 0
  %v557 = vsel %vm239, %v502, 0
  %v560 = vsel %vm239, %v503, 0
  %v563 = vsel %vm239, %v504, 0
  %565 = vmatprep.subr.mxu0 0.0
  %566 = vmatpush1.msra.mxu0 0.0
  %567 = vmatprep.subr.mxu0 0.0
  %568 = vmatpush1.msra.mxu0 0.0
  %569 = vmatprep.subr.mxu0 0.0
  %570 = vmatpush1.msra.mxu0 0.0
  %571 = vmatprep.subr.mxu0 0.0
  %572 = vmatpush1.msra.mxu0 0.0
  %573 = vmatprep.subr.mxu0 0.0
  %574 = vmatpush1.msra.mxu0 0.0
  %575 = vmatprep.subr.mxu0 0.0
  %576 = vmatpush1.msra.mxu0 0.0
  %577 = vmatprep.subr.mxu0 0.0
  %578 = vmatpush1.msra.mxu0 0.0
  %579 = vmatprep.subr.mxu0 0.0
  %580 = vmatpush1.msra.mxu0 0.0
  %581 = vmatprep.subr.mxu0 0.0
  %582 = vmatpush1.msra.mxu0 0.0
  %583 = vmatprep.subr.mxu0 0.0
  %584 = vmatpush1.msra.mxu0 0.0
  %585 = vmatprep.subr.mxu0 0.0
  %586 = vmatpush1.msra.mxu0 0.0
  %587 = vmatprep.subr.mxu0 0.0
  %588 = vmatpush1.msra.mxu0 0.0
  %589 = vmatprep.subr.mxu0 0.0
  %590 = vmatpush1.msra.mxu0 %v508
  %591 = vmatprep.subr.mxu0 0.0
  %592 = vmatpush1.msra.mxu0 %v507
  %593 = vmatprep.subr.mxu0 0.0
  %594 = vmatpush1.msra.mxu0 %v506
  %595 = vmatprep.subr.mxu0 0.0
  %596 = vmatpush1.msra.mxu0 %v505
  %597 = vmatprep.subr.mxu0 0.0
  %598 = vmatpush2.msra.mxu0 0.0
  %599 = vmatprep.subr.mxu0 0.0
  %600 = vmatpush2.msra.mxu0 0.0
  %601 = vmatprep.subr.mxu0 0.0
  %602 = vmatpush2.msra.mxu0 0.0
  %603 = vmatprep.subr.mxu0 0.0
  %604 = vmatpush2.msra.mxu0 0.0
  %605 = vmatprep.subr.mxu0 0.0
  %606 = vmatpush2.msra.mxu0 0.0
  %607 = vmatprep.subr.mxu0 0.0
  %608 = vmatpush2.msra.mxu0 0.0
  %609 = vmatprep.subr.mxu0 0.0
  %610 = vmatpush2.msra.mxu0 0.0
  %611 = vmatprep.subr.mxu0 0.0
  %612 = vmatpush2.msra.mxu0 0.0
  %613 = vmatprep.subr.mxu0 0.0
  %614 = vmatpush2.msra.mxu0 0.0
  %615 = vmatprep.subr.mxu0 0.0
  %616 = vmatpush2.msra.mxu0 0.0
  %617 = vmatprep.subr.mxu0 0.0
  %618 = vmatpush2.msra.mxu0 0.0
  %619 = vmatprep.subr.mxu0 0.0
  %620 = vmatpush2.msra.mxu0 0.0
  %621 = vmatprep.subr.mxu0 0.0
  %622 = vmatpush2.msra.mxu0 0.0
  %623 = vmatprep.subr.mxu0 0.0
  %624 = vmatpush2.msra.mxu0 0.0
  %625 = vmatprep.subr.mxu0 0.0
  %626 = vmatpush2.msra.mxu0 0.0
  %627 = vmatprep.subr.mxu0 0.0
  %628 = vmatpush2.msra.mxu0 0.0
  %629 = vmatprep.mubr.f32.mxu0 0.0
  %630 = vmatmul.mubr.f32.gmra.mxu0 %v518
  %v631 = vpop.f32.mrf.mxu0
  %v632 = vadd.f32 %v516, %v631
  %v633 = vpop.f32.mrf.mxu0
  %634 = vmatprep.mubr.f32.mxu0 0.0
  %635 = vmatmul.mubr.f32.gmra.mxu0 %v521
  %v636 = vpop.f32.mrf.mxu0
  %v637 = vadd.f32 %v516, %v636
  %v638 = vpop.f32.mrf.mxu0
  %639 = vmatprep.mubr.f32.mxu0 0.0
  %640 = vmatmul.mubr.f32.gmra.mxu0 %v524
  %v641 = vpop.f32.mrf.mxu0
  %v642 = vadd.f32 %v516, %v641
  %v643 = vpop.f32.mrf.mxu0
  %644 = vmatprep.mubr.f32.mxu0 0.0
  %645 = vmatmul.mubr.f32.gmra.mxu0 %v527
  %v646 = vpop.f32.mrf.mxu0
  %v647 = vadd.f32 %v516, %v646
  %v648 = vpop.f32.mrf.mxu0
  %649 = vmatprep.mubr.f32.mxu0 0.0
  %650 = vmatmul.mubr.f32.gmra.mxu0 %v530
  %v651 = vpop.f32.mrf.mxu0
  %v652 = vadd.f32 %v516, %v651
  %v653 = vpop.f32.mrf.mxu0
  %654 = vmatprep.mubr.f32.mxu0 0.0
  %655 = vmatmul.mubr.f32.gmra.mxu0 %v533
  %v656 = vpop.f32.mrf.mxu0
  %v657 = vadd.f32 %v516, %v656
  %v658 = vpop.f32.mrf.mxu0
  %659 = vmatprep.mubr.f32.mxu0 0.0
  %660 = vmatmul.mubr.f32.gmra.mxu0 %v536
  %v661 = vpop.f32.mrf.mxu0
  %v662 = vadd.f32 %v516, %v661
  %v663 = vpop.f32.mrf.mxu0
  %664 = vmatprep.mubr.f32.mxu0 0.0
  %665 = vmatmul.mubr.f32.gmra.mxu0 %v539
  %v666 = vpop.f32.mrf.mxu0
  %v667 = vadd.f32 %v516, %v666
  %v668 = vpop.f32.mrf.mxu0
  %669 = vmatprep.mubr.f32.mxu0 0.0
  %670 = vmatmul.mubr.f32.gmra.mxu0 %v542
  %v671 = vpop.f32.mrf.mxu0
  %v672 = vadd.f32 %v516, %v671
  %v673 = vpop.f32.mrf.mxu0
  %674 = vmatprep.mubr.f32.mxu0 0.0
  %675 = vmatmul.mubr.f32.gmra.mxu0 %v545
  %v676 = vpop.f32.mrf.mxu0
  %v677 = vadd.f32 %v516, %v676
  %v678 = vpop.f32.mrf.mxu0
  %679 = vmatprep.mubr.f32.mxu0 0.0
  %680 = vmatmul.mubr.f32.gmra.mxu0 %v548
  %v681 = vpop.f32.mrf.mxu0
  %v682 = vadd.f32 %v516, %v681
  %v683 = vpop.f32.mrf.mxu0
  %684 = vmatprep.mubr.f32.mxu0 0.0
  %685 = vmatmul.mubr.f32.gmra.mxu0 %v551
  %v686 = vpop.f32.mrf.mxu0
  %v687 = vadd.f32 %v516, %v686
  %v688 = vpop.f32.mrf.mxu0
  %689 = vmatprep.mubr.f32.mxu0 0.0
  %690 = vmatmul.mubr.f32.gmra.mxu0 %v554
  %v691 = vpop.f32.mrf.mxu0
  %v692 = vadd.f32 %v516, %v691
  %v693 = vpop.f32.mrf.mxu0
  %694 = vmatprep.mubr.f32.mxu0 0.0
  %695 = vmatmul.mubr.f32.gmra.mxu0 %v557
  %v696 = vpop.f32.mrf.mxu0
  %v697 = vadd.f32 %v516, %v696
  %v698 = vpop.f32.mrf.mxu0
  %699 = vmatprep.mubr.f32.mxu0 0.0
  %700 = vmatmul.mubr.f32.gmra.mxu0 %v560
  %v701 = vpop.f32.mrf.mxu0
  %v702 = vadd.f32 %v516, %v701
  %v703 = vpop.f32.mrf.mxu0
  %704 = vmatprep.mubr.f32.mxu0 0.0
  %705 = vmatmul.mubr.f32.gmra.mxu0 %v563
  %v706 = vpop.f32.mrf.mxu0
  %v707 = vadd.f32 %v516, %v706
  %v708 = vpop.f32.mrf.mxu0
  %709 = vdwg.mxu0
  %v710 = vmax.f32 %v632, 0.0
  %v711 = vmax.f32 %v637, 0.0
  %v712 = vmax.f32 %v642, 0.0
  %v713 = vmax.f32 %v647, 0.0
  %v714 = vmax.f32 %v652, 0.0
  %v715 = vmax.f32 %v657, 0.0
  %v716 = vmax.f32 %v662, 0.0
  %v717 = vmax.f32 %v667, 0.0
  %v718 = vmax.f32 %v672, 0.0
  %v719 = vmax.f32 %v677, 0.0
  %v720 = vmax.f32 %v682, 0.0
  %v721 = vmax.f32 %v687, 0.0
  %v722 = vmax.f32 %v692, 0.0
  %v723 = vmax.f32 %v697, 0.0
  %v724 = vmax.f32 %v702, 0.0
  %v725 = vmax.f32 %v707, 0.0
  %v726 = vlaneseq
  %v727 = vshrl.u32 %v726, 7
  %v728 = vsub.s32 0, %v727
  %v729 = vrot.slane %v21, %v728
  %v731 = vsel %vm239, %v710, 0
  %v734 = vsel %vm239, %v711, 0
  %v737 = vsel %vm239, %v712, 0
  %v740 = vsel %vm239, %v713, 0
  %v743 = vsel %vm239, %v714, 0
  %v746 = vsel %vm239, %v715, 0
  %v749 = vsel %vm239, %v716, 0
  %v752 = vsel %vm239, %v717, 0
  %v755 = vsel %vm239, %v718, 0
  %v758 = vsel %vm239, %v719, 0
  %v761 = vsel %vm239, %v720, 0
  %v764 = vsel %vm239, %v721, 0
  %v767 = vsel %vm239, %v722, 0
  %v770 = vsel %vm239, %v723, 0
  %v773 = vsel %vm239, %v724, 0
  %v776 = vsel %vm239, %v725, 0
  %778 = vmatprep.subr.mxu0 0.0
  %779 = vmatpush1.msra.mxu0 0.0
  %780 = vmatprep.subr.mxu0 0.0
  %781 = vmatpush1.msra.mxu0 0.0
  %782 = vmatprep.subr.mxu0 0.0
  %783 = vmatpush1.msra.mxu0 0.0
  %784 = vmatprep.subr.mxu0 0.0
  %785 = vmatpush1.msra.mxu0 0.0
  %786 = vmatprep.subr.mxu0 0.0
  %787 = vmatpush1.msra.mxu0 0.0
  %788 = vmatprep.subr.mxu0 0.0
  %789 = vmatpush1.msra.mxu0 0.0
  %790 = vmatprep.subr.mxu0 0.0
  %791 = vmatpush1.msra.mxu0 0.0
  %792 = vmatprep.subr.mxu0 0.0
  %793 = vmatpush1.msra.mxu0 0.0
  %794 = vmatprep.subr.mxu0 0.0
  %795 = vmatpush1.msra.mxu0 0.0
  %796 = vmatprep.subr.mxu0 0.0
  %797 = vmatpush1.msra.mxu0 0.0
  %798 = vmatprep.subr.mxu0 0.0
  %799 = vmatpush1.msra.mxu0 0.0
  %800 = vmatprep.subr.mxu0 0.0
  %801 = vmatpush1.msra.mxu0 0.0
  %802 = vmatprep.subr.mxu0 0.0
  %803 = vmatpush1.msra.mxu0 %v512
  %804 = vmatprep.subr.mxu0 0.0
  %805 = vmatpush1.msra.mxu0 %v511
  %806 = vmatprep.subr.mxu0 0.0
  %807 = vmatpush1.msra.mxu0 %v510
  %808 = vmatprep.subr.mxu0 0.0
  %809 = vmatpush1.msra.mxu0 %v509
  %810 = vmatprep.subr.mxu0 0.0
  %811 = vmatpush2.msra.mxu0 0.0
  %812 = vmatprep.subr.mxu0 0.0
  %813 = vmatpush2.msra.mxu0 0.0
  %814 = vmatprep.subr.mxu0 0.0
  %815 = vmatpush2.msra.mxu0 0.0
  %816 = vmatprep.subr.mxu0 0.0
  %817 = vmatpush2.msra.mxu0 0.0
  %818 = vmatprep.subr.mxu0 0.0
  %819 = vmatpush2.msra.mxu0 0.0
  %820 = vmatprep.subr.mxu0 0.0
  %821 = vmatpush2.msra.mxu0 0.0
  %822 = vmatprep.subr.mxu0 0.0
  %823 = vmatpush2.msra.mxu0 0.0
  %824 = vmatprep.subr.mxu0 0.0
  %825 = vmatpush2.msra.mxu0 0.0
  %826 = vmatprep.subr.mxu0 0.0
  %827 = vmatpush2.msra.mxu0 0.0
  %828 = vmatprep.subr.mxu0 0.0
  %829 = vmatpush2.msra.mxu0 0.0
  %830 = vmatprep.subr.mxu0 0.0
  %831 = vmatpush2.msra.mxu0 0.0
  %832 = vmatprep.subr.mxu0 0.0
  %833 = vmatpush2.msra.mxu0 0.0
  %834 = vmatprep.subr.mxu0 0.0
  %835 = vmatpush2.msra.mxu0 0.0
  %836 = vmatprep.subr.mxu0 0.0
  %837 = vmatpush2.msra.mxu0 0.0
  %838 = vmatprep.subr.mxu0 0.0
  %839 = vmatpush2.msra.mxu0 0.0
  %840 = vmatprep.subr.mxu0 0.0
  %841 = vmatpush2.msra.mxu0 0.0
  %842 = vmatprep.mubr.f32.mxu0 0.0
  %843 = vmatmul.mubr.f32.gmra.mxu0 %v731
  %v844 = vpop.f32.mrf.mxu0
  %v845 = vadd.f32 %v729, %v844
  %v846 = vpop.f32.mrf.mxu0
  %847 = vmatprep.mubr.f32.mxu0 0.0
  %848 = vmatmul.mubr.f32.gmra.mxu0 %v734
  %v849 = vpop.f32.mrf.mxu0
  %v850 = vadd.f32 %v729, %v849
  %v851 = vpop.f32.mrf.mxu0
  %852 = vmatprep.mubr.f32.mxu0 0.0
  %853 = vmatmul.mubr.f32.gmra.mxu0 %v737
  %v854 = vpop.f32.mrf.mxu0
  %v855 = vadd.f32 %v729, %v854
  %v856 = vpop.f32.mrf.mxu0
  %857 = vmatprep.mubr.f32.mxu0 0.0
  %858 = vmatmul.mubr.f32.gmra.mxu0 %v740
  %v859 = vpop.f32.mrf.mxu0
  %v860 = vadd.f32 %v729, %v859
  %v861 = vpop.f32.mrf.mxu0
  %862 = vmatprep.mubr.f32.mxu0 0.0
  %863 = vmatmul.mubr.f32.gmra.mxu0 %v743
  %v864 = vpop.f32.mrf.mxu0
  %v865 = vadd.f32 %v729, %v864
  %v866 = vpop.f32.mrf.mxu0
  %867 = vmatprep.mubr.f32.mxu0 0.0
  %868 = vmatmul.mubr.f32.gmra.mxu0 %v746
  %v869 = vpop.f32.mrf.mxu0
  %v870 = vadd.f32 %v729, %v869
  %v871 = vpop.f32.mrf.mxu0
  %872 = vmatprep.mubr.f32.mxu0 0.0
  %873 = vmatmul.mubr.f32.gmra.mxu0 %v749
  %v874 = vpop.f32.mrf.mxu0
  %v875 = vadd.f32 %v729, %v874
  %v876 = vpop.f32.mrf.mxu0
  %877 = vmatprep.mubr.f32.mxu0 0.0
  %878 = vmatmul.mubr.f32.gmra.mxu0 %v752
  %v879 = vpop.f32.mrf.mxu0
  %v880 = vadd.f32 %v729, %v879
  %v881 = vpop.f32.mrf.mxu0
  %882 = vmatprep.mubr.f32.mxu0 0.0
  %883 = vmatmul.mubr.f32.gmra.mxu0 %v755
  %v884 = vpop.f32.mrf.mxu0
  %v885 = vadd.f32 %v729, %v884
  %v886 = vpop.f32.mrf.mxu0
  %887 = vmatprep.mubr.f32.mxu0 0.0
  %888 = vmatmul.mubr.f32.gmra.mxu0 %v758
  %v889 = vpop.f32.mrf.mxu0
  %v890 = vadd.f32 %v729, %v889
  %v891 = vpop.f32.mrf.mxu0
  %892 = vmatprep.mubr.f32.mxu0 0.0
  %893 = vmatmul.mubr.f32.gmra.mxu0 %v761
  %v894 = vpop.f32.mrf.mxu0
  %v895 = vadd.f32 %v729, %v894
  %v896 = vpop.f32.mrf.mxu0
  %897 = vmatprep.mubr.f32.mxu0 0.0
  %898 = vmatmul.mubr.f32.gmra.mxu0 %v764
  %v899 = vpop.f32.mrf.mxu0
  %v900 = vadd.f32 %v729, %v899
  %v901 = vpop.f32.mrf.mxu0
  %902 = vmatprep.mubr.f32.mxu0 0.0
  %903 = vmatmul.mubr.f32.gmra.mxu0 %v767
  %v904 = vpop.f32.mrf.mxu0
  %v905 = vadd.f32 %v729, %v904
  %v906 = vpop.f32.mrf.mxu0
  %907 = vmatprep.mubr.f32.mxu0 0.0
  %908 = vmatmul.mubr.f32.gmra.mxu0 %v770
  %v909 = vpop.f32.mrf.mxu0
  %v910 = vadd.f32 %v729, %v909
  %v911 = vpop.f32.mrf.mxu0
  %912 = vmatprep.mubr.f32.mxu0 0.0
  %913 = vmatmul.mubr.f32.gmra.mxu0 %v773
  %v914 = vpop.f32.mrf.mxu0
  %v915 = vadd.f32 %v729, %v914
  %v916 = vpop.f32.mrf.mxu0
  %917 = vmatprep.mubr.f32.mxu0 0.0
  %918 = vmatmul.mubr.f32.gmra.mxu0 %v776
  %v919 = vpop.f32.mrf.mxu0
  %v920 = vadd.f32 %v729, %v919
  %v921 = vpop.f32.mrf.mxu0
  %922 = vdwg.mxu0
  %v923 = vtanh.pop %v845
  %v924 = vtanh.pop %v850
  %v925 = vtanh.pop %v855
  %v926 = vtanh.pop %v860
  %v927 = vtanh.pop %v865
  %v928 = vtanh.pop %v870
  %v929 = vtanh.pop %v875
  %v930 = vtanh.pop %v880
  %v931 = vtanh.pop %v885
  %v932 = vtanh.pop %v890
  %v933 = vtanh.pop %v895
  %v934 = vtanh.pop %v900
  %v935 = vtanh.pop %v905
  %v936 = vtanh.pop %v910
  %v937 = vtanh.pop %v915
  %v938 = vtanh.pop %v920
  %v939 = vadd.f32 %v923, 1.0
  %v940 = vadd.f32 %v924, 1.0
  %v941 = vadd.f32 %v925, 1.0
  %v942 = vadd.f32 %v926, 1.0
  %v943 = vadd.f32 %v927, 1.0
  %v944 = vadd.f32 %v928, 1.0
  %v945 = vadd.f32 %v929, 1.0
  %v946 = vadd.f32 %v930, 1.0
  %v947 = vadd.f32 %v931, 1.0
  %v948 = vadd.f32 %v932, 1.0
  %v949 = vadd.f32 %v933, 1.0
  %v950 = vadd.f32 %v934, 1.0
  %v951 = vadd.f32 %v935, 1.0
  %v952 = vadd.f32 %v936, 1.0
  %v953 = vadd.f32 %v937, 1.0
  %v954 = vadd.f32 %v938, 1.0
  %v955 = vmul.f32 %v939, 6.0
  %v956 = vmul.f32 %v940, 6.0
  %v957 = vmul.f32 %v941, 6.0
  %v958 = vmul.f32 %v942, 6.0
  %v959 = vmul.f32 %v943, 6.0
  %v960 = vmul.f32 %v944, 6.0
  %v961 = vmul.f32 %v945, 6.0
  %v962 = vmul.f32 %v946, 6.0
  %v963 = vmul.f32 %v947, 6.0
  %v964 = vmul.f32 %v948, 6.0
  %v965 = vmul.f32 %v949, 6.0
  %v966 = vmul.f32 %v950, 6.0
  %v967 = vmul.f32 %v951, 6.0
  %v968 = vmul.f32 %v952, 6.0
  %v969 = vmul.f32 %v953, 6.0
  %v970 = vmul.f32 %v954, 6.0
  %v971 = vadd.f32 %v955, -10.0
  %v972 = vadd.f32 %v956, -10.0
  %v973 = vadd.f32 %v957, -10.0
  %v974 = vadd.f32 %v958, -10.0
  %v975 = vadd.f32 %v959, -10.0
  %v976 = vadd.f32 %v960, -10.0
  %v977 = vadd.f32 %v961, -10.0
  %v978 = vadd.f32 %v962, -10.0
  %v979 = vadd.f32 %v963, -10.0
  %v980 = vadd.f32 %v964, -10.0
  %v981 = vadd.f32 %v965, -10.0
  %v982 = vadd.f32 %v966, -10.0
  %v983 = vadd.f32 %v967, -10.0
  %v984 = vadd.f32 %v968, -10.0
  %v985 = vadd.f32 %v969, -10.0
  %v986 = vadd.f32 %v970, -10.0
  %v987 = vmul.f32 %v971, 1.442695
  %v988 = vpow.pop %v987
  %v989 = vmul.f32 %v972, 1.442695
  %v990 = vpow.pop %v989
  %v991 = vmul.f32 %v973, 1.442695
  %v992 = vpow.pop %v991
  %v993 = vmul.f32 %v974, 1.442695
  %v994 = vpow.pop %v993
  %v995 = vmul.f32 %v975, 1.442695
  %v996 = vpow.pop %v995
  %v997 = vmul.f32 %v976, 1.442695
  %v998 = vpow.pop %v997
  %v999 = vmul.f32 %v977, 1.442695
  %v1000 = vpow.pop %v999
  %v1001 = vmul.f32 %v978, 1.442695
  %v1002 = vpow.pop %v1001
  %v1003 = vmul.f32 %v979, 1.442695
  %v1004 = vpow.pop %v1003
  %v1005 = vmul.f32 %v980, 1.442695
  %v1006 = vpow.pop %v1005
  %v1007 = vmul.f32 %v981, 1.442695
  %v1008 = vpow.pop %v1007
  %v1009 = vmul.f32 %v982, 1.442695
  %v1010 = vpow.pop %v1009
  %v1011 = vmul.f32 %v983, 1.442695
  %v1012 = vpow.pop %v1011
  %v1013 = vmul.f32 %v984, 1.442695
  %v1014 = vpow.pop %v1013
  %v1015 = vmul.f32 %v985, 1.442695
  %v1016 = vpow.pop %v1015
  %v1017 = vmul.f32 %v986, 1.442695
  %v1018 = vpow.pop %v1017
  %v1019 = vlaneseq
  %v1020 = vand.u32 %v1019, 127
  %vm1021 = vcmp.lt.s32.totalorder %v1020, 6
  %v1022 = vsel %vm1021, %v845, %v988
  %v1023 = vsel %vm1021, %v850, %v990
  %v1024 = vsel %vm1021, %v855, %v992
  %v1025 = vsel %vm1021, %v860, %v994
  %v1026 = vsel %vm1021, %v865, %v996
  %v1027 = vsel %vm1021, %v870, %v998
  %v1028 = vsel %vm1021, %v875, %v1000
  %v1029 = vsel %vm1021, %v880, %v1002
  %v1030 = vsel %vm1021, %v885, %v1004
  %v1031 = vsel %vm1021, %v890, %v1006
  %v1032 = vsel %vm1021, %v895, %v1008
  %v1033 = vsel %vm1021, %v900, %v1010
  %v1034 = vsel %vm1021, %v905, %v1012
  %v1035 = vsel %vm1021, %v910, %v1014
  %v1036 = vsel %vm1021, %v915, %v1016
  %v1037 = vsel %vm1021, %v920, %v1018
  %1038 = vst.msk [vmem:[%s4] sm:$0xff] %vm239, %v1022
  %1039 = vst.msk [vmem:[%s4 + $0x8] sm:$0xff] %vm239, %v1023
  %1040 = vst.msk [vmem:[%s4 + $0x10] sm:$0xff] %vm239, %v1024
  %1041 = vst.msk [vmem:[%s4 + $0x18] sm:$0xff] %vm239, %v1025
  %1042 = vst.msk [vmem:[%s4 + $0x20] sm:$0xff] %vm239, %v1026
  %1043 = vst.msk [vmem:[%s4 + $0x28] sm:$0xff] %vm239, %v1027
  %1044 = vst.msk [vmem:[%s4 + $0x30] sm:$0xff] %vm239, %v1028
  %1045 = vst.msk [vmem:[%s4 + $0x38] sm:$0xff] %vm239, %v1029
  %1046 = vst.msk [vmem:[%s4 + $0x40] sm:$0xff] %vm239, %v1030
  %1047 = vst.msk [vmem:[%s4 + $0x48] sm:$0xff] %vm239, %v1031
  %1048 = vst.msk [vmem:[%s4 + $0x50] sm:$0xff] %vm239, %v1032
  %1049 = vst.msk [vmem:[%s4 + $0x58] sm:$0xff] %vm239, %v1033
  %1050 = vst.msk [vmem:[%s4 + $0x60] sm:$0xff] %vm239, %v1034
  %1051 = vst.msk [vmem:[%s4 + $0x68] sm:$0xff] %vm239, %v1035
  %1052 = vst.msk [vmem:[%s4 + $0x70] sm:$0xff] %vm239, %v1036
  %1053 = vst.msk [vmem:[%s4 + $0x78] sm:$0xff] %vm239, %v1037
  // Predicated region
  $region18: #{tpu_custom_call.1} parent=0 // pred_check
    _
  $region19: #{tpu_custom_call.1} parent=0 // pred_check_branch
    %1055 = sbr.rel (0) target = $region21
  $region20: #{tpu_custom_call.1} parent=0 // pred_region
    _
  $region21: #{tpu_custom_call.1} parent=0 // pred_fallthru
    _
  // Predicated region
  $region22: #{tpu_custom_call.1} parent=0 // pred_check
    _
  $region23: #{tpu_custom_call.1} parent=0 // pred_check_branch
    %1057 = sbr.rel (0) target = $region25
  $region24: #{tpu_custom_call.1} parent=0 // pred_region
    _
  $region25: #{tpu_custom_call.1} parent=0 // pred_fallthru
    _

</llo_original>
